<compile_context>
chip_gen: v7x
topology: tpu7x:2x2x1
jax: 0.10.0
libtpu: 0.0.40
codegen_flags: <defaults>
</compile_context>

<pallas_src>
from abc import ABC, abstractmethod
from functools import partial, lru_cache

import jax
import jax.numpy as jnp
from jax import lax
from jax.experimental import pallas as pl
from jax.experimental.pallas import tpu as pltpu


# ---------------------------------------------------------------------------
# VMEM budgeting (generation-aware) and tile selection.
# ---------------------------------------------------------------------------
_TD_MAX = 65536  # caps the (1, TD) f32 accumulator at 256 KiB


def _round_up(x, m):
    return ((x + m - 1) // m) * m


@lru_cache(maxsize=None)
def _vmem_budgets():
    """(per-input block budget bytes, scoped vmem_limit_bytes)."""
    try:
        phys = int(pltpu.get_tpu_info().vmem_capacity_bytes)
    except Exception:
        phys = 64 * 1024 * 1024          # conservative (v7x per-TC VMEM)
    vmem_limit = max(16 * 1024 * 1024, min(32 * 1024 * 1024, phys // 2))
    # 2 inputs x 2 double-buffers x per_input + accumulator + slack <= limit.
    per_input = max(2 * 1024 * 1024, (vmem_limit - 8 * 1024 * 1024) // 4)
    return per_input, vmem_limit


def _choose_tiles(B, D, itemsize, per_input_budget):
    """Pick (TB, TD): prefer contiguous full rows (TD = D), shrink TB instead.
    TB multiple of 8 (or == B); TD multiple of 128 (or == D)."""
    d_pad = _round_up(D, 128)
    if D <= _TD_MAX and 8 * d_pad * itemsize <= per_input_budget:
        TD = D                                            # full contiguous rows
    else:
        TD = min(_TD_MAX, per_input_budget // (8 * itemsize), d_pad)
        TD = max(128, (TD // 128) * 128)
        TD = min(TD, D)
    td_pad = _round_up(TD, 128)                           # VMEM lane padding
    tb_cap = max(8, (per_input_budget // (td_pad * itemsize)) // 8 * 8)
    TB = B if B <= tb_cap else tb_cap
    return TB, TD


# ---------------------------------------------------------------------------
# Fused kernel: per-batch MSE + batch reduction in one pass.
#   preds, targets: [B, D] -> lane-dense per-batch-tile partials (n_i, 8, 128)
#   (only [i, 0, 0] is non-zero); wrapper does sum * scale.
#   mean: sum(diff^2) / (B*D)     sum: sum(diff^2) / D
# ---------------------------------------------------------------------------
def _fused_mse_reduce_kernel(p_ref, t_ref, out_ref, acc_ref, *,
                             B, D, TB, TD, need_row_mask, need_col_mask):
    i = pl.program_id(0)                  # batch-tile index ("parallel")
    j = pl.program_id(1)                  # feature-tile index (reduction, last)
    n_j = pl.num_programs(1)

    # Re-init the vector accumulator at the start of every batch-tile's j-loop
    # (required for megacore sharding of the i axis).
    @pl.when(j == 0)
    def _init():
        acc_ref[...] = jnp.zeros_like(acc_ref)

    p = p_ref[...].astype(jnp.float32)    # f32 upcast in-register (v5e: no bf16 VALU)
    t = t_ref[...].astype(jnp.float32)
    diff = p - t
    sq = diff * diff

    def _accum(vals):
        # Cheap sublane reduction into the VMEM vector accumulator.  The
        # loop-carried op is just a (1, TD) vector add; no cross-lane reduce
        # and no scalar extraction per grid step.
        acc_ref[...] += jnp.sum(vals, axis=0, keepdims=True)

    if need_row_mask or need_col_mask:
        # Boundary-only masking: interior tiles take the unmasked path.
        if need_row_mask and need_col_mask:
            is_boundary = jnp.logical_or(i == pl.num_programs(0) - 1,
                                         j == n_j - 1)
        elif need_row_mask:
            is_boundary = i == pl.num_programs(0) - 1
        else:
            is_boundary = j == n_j - 1

        @pl.when(is_boundary)
        def _masked():
            m = sq
            if need_row_mask:
                row = i * TB + lax.broadcasted_iota(jnp.int32, (TB, TD), 0)
                m = jnp.where(row < B, m, 0.0)
            if need_col_mask:
                col = j * TD + lax.broadcasted_iota(jnp.int32, (TB, TD), 1)
                m = jnp.where(col < D, m, 0.0)
            _accum(m)

        @pl.when(jnp.logical_not(is_boundary))
        def _plain():
            _accum(sq)
    else:
        _accum(sq)

    # Finalize once per batch-tile: single full reduce of the accumulator,
    # stored lane-dense at [0, 0] of this tile's (1, 8, 128) output block.
    @pl.when(j == n_j - 1)
    def _finalize():
        total = jnp.sum(acc_ref[...])
        r = lax.broadcasted_iota(jnp.int32, (8, 128), 0)
        c = lax.broadcasted_iota(jnp.int32, (8, 128), 1)
        out_ref[0] = jnp.where(jnp.logical_and(r == 0, c == 0),
                               total, jnp.float32(0.0))


@lru_cache(maxsize=None)
def _build_fused_mse_reduce(B, D, pred_dtype, tgt_dtype, reduction,
                            tile_override=None):
    itemsize = max(jnp.dtype(pred_dtype).itemsize,
                   jnp.dtype(tgt_dtype).itemsize)
    per_input_budget, vmem_limit = _vmem_budgets()
    if tile_override is not None:
        TB, TD = tile_override
    else:
        TB, TD = _choose_tiles(B, D, itemsize, per_input_budget)
    n_i, n_j = pl.cdiv(B, TB), pl.cdiv(D, TD)
    need_row_mask = (B % TB) != 0
    need_col_mask = (D % TD) != 0
    # per-batch MSE = mean over D; then mean/sum over B.
    scale = (1.0 / (B * D)) if reduction == "mean" else (1.0 / D)

    kernel = partial(_fused_mse_reduce_kernel, B=B, D=D, TB=TB, TD=TD,
                     need_row_mask=need_row_mask, need_col_mask=need_col_mask)
    call = pl.pallas_call(
        kernel,
        out_shape=jax.ShapeDtypeStruct((n_i, 8, 128), jnp.float32),
        grid=(n_i, n_j),
        in_specs=[
            pl.BlockSpec((TB, TD), lambda i, j: (i, j)),
            pl.BlockSpec((TB, TD), lambda i, j: (i, j)),
        ],
        # Lane-dense per-batch-tile partials; block index constant across j
        # (accumulator-style residency), varies with i (parallel axis).
        out_specs=pl.BlockSpec((1, 8, 128), lambda i, j: (i, 0, 0)),
        scratch_shapes=[pltpu.VMEM((1, TD), jnp.float32)],
        compiler_params=pltpu.CompilerParams(
            # batch-tile axis shards across TensorCores on v7x; reduction
            # axis (j, carrying the accumulator) stays sequential & last.
            dimension_semantics=("parallel", "arbitrary"),
            vmem_limit_bytes=vmem_limit),
    )

    @jax.jit
    def run(preds, targets):
        partials = call(preds, targets)
        # Tiny cross-tile combine + the single scale multiply, fused into the
        # same executable as the pallas_call (one dispatch total).
        return jnp.sum(partials) * jnp.float32(scale)

    return run


def _fused_mse_reduce(preds, targets, reduction, tile_override=None):
    B, D = preds.shape
    fn = _build_fused_mse_reduce(B, D, str(preds.dtype), str(targets.dtype),
                                 reduction, tile_override)
    return fn(preds, targets)              # 0-d f32 device scalar


# ---------------------------------------------------------------------------
# Fallback per-batch kernel: [B, D] x 2 -> [B, 1] per-batch MSE.
# Tiled over (B, D) with an output-resident accumulator so large inputs never
# require whole-array VMEM residency.
# ---------------------------------------------------------------------------
def _mse_per_batch_kernel(p_ref, t_ref, out_ref, *, D, TD, need_col_mask):
    j = pl.program_id(1)

    @pl.when(j == 0)
    def _init():
        out_ref[...] = jnp.zeros_like(out_ref)

    p = p_ref[...].astype(jnp.float32)
    t = t_ref[...].astype(jnp.float32)
    sq = (p - t) * (p - t)
    if need_col_mask:
        col = j * TD + lax.broadcasted_iota(jnp.int32, sq.shape, 1)
        sq = jnp.where(col < D, sq, 0.0)
    out_ref[...] += jnp.sum(sq, axis=1, keepdims=True)

    @pl.when(j == pl.num_programs(1) - 1)
    def _finalize():
        out_ref[...] = out_ref[...] * jnp.float32(1.0 / D)


@lru_cache(maxsize=None)
def _build_mse_per_batch(B, D, pred_dtype, tgt_dtype):
    itemsize = max(jnp.dtype(pred_dtype).itemsize,
                   jnp.dtype(tgt_dtype).itemsize)
    per_input_budget, vmem_limit = _vmem_budgets()
    TB, TD = _choose_tiles(B, D, itemsize, per_input_budget)
    n_i, n_j = pl.cdiv(B, TB), pl.cdiv(D, TD)
    kernel = partial(_mse_per_batch_kernel, D=D, TD=TD,
                     need_col_mask=(D % TD) != 0)
    call = pl.pallas_call(
        kernel,
        out_shape=jax.ShapeDtypeStruct((B, 1), jnp.float32),
        grid=(n_i, n_j),
        in_specs=[
            pl.BlockSpec((TB, TD), lambda i, j: (i, j)),
            pl.BlockSpec((TB, TD), lambda i, j: (i, j)),
        ],
        out_specs=pl.BlockSpec((TB, 1), lambda i, j: (i, 0)),
        compiler_params=pltpu.CompilerParams(
            dimension_semantics=("parallel", "arbitrary"),
            vmem_limit_bytes=vmem_limit),
    )
    return jax.jit(lambda p, t: call(p, t))


def _mse_per_batch(preds, targets):
    B, D = preds.shape
    return _build_mse_per_batch(B, D, str(preds.dtype),
                                str(targets.dtype))(preds, targets)


# ---------------------------------------------------------------------------
# Base-class fallback reduce kernel (used when a subclass only provides
# compute_values_per_batch).  Per-batch values presented lane-dense as (1, B).
# ---------------------------------------------------------------------------
def _batch_reduce_kernel(vals_ref, out_ref, *, B, reduction):
    v = vals_ref[...].astype(jnp.float32)          # (1, B), B on lanes
    total = jnp.sum(v)
    if reduction == "mean":
        total = total * jnp.float32(1.0 / B)
    out_ref[0, 0] = total


@lru_cache(maxsize=None)
def _build_batch_reduce(B, dtype, reduction):
    call = pl.pallas_call(
        partial(_batch_reduce_kernel, B=B, reduction=reduction),
        out_shape=jax.ShapeDtypeStruct((1, 1), jnp.float32),
        in_specs=[pl.BlockSpec(memory_space=pltpu.MemorySpace.VMEM)],
        out_specs=pl.BlockSpec(memory_space=pltpu.MemorySpace.SMEM),
    )
    return jax.jit(lambda v: call(v)[0, 0])


def _batch_reduce(vals, reduction):
    B = vals.shape[0]
    vals_row = jnp.reshape(vals, (1, B))           # lane-dense presentation
    return _build_batch_reduce(B, str(vals_row.dtype), reduction)(vals_row)


# ---------------------------------------------------------------------------
# Module mirroring the PyTorch Metric base class.
# ---------------------------------------------------------------------------
class Metric(ABC):
    def __init__(self, reduction=None, return_device_scalar=False):
        assert reduction in [None, "mean", "sum"], (
            "Invalid reduction type. Correct values: [None, mean, sum]."
        )
        self.reduction = reduction
        assert self.reduction in ["mean", "sum"], (
            "Trainer support only float values. Correct values: [mean, sum]."
        )
        # If True, skip the device->host sync and return a 0-d device scalar
        # (caller batches the sync once per logging step).
        self.return_device_scalar = return_device_scalar

    @abstractmethod
    def compute_values_per_batch(self, *args):
        raise NotImplementedError

    def compute_reduced(self, *args):
        """Default (unfused) path: tiled per-batch kernel + lane-dense reduce.
        Subclasses may override with a fused single-pass kernel."""
        vals = self.compute_values_per_batch(*args)
        return _batch_reduce(vals, self.reduction)

    def __call__(self, *args):
        # torch.no_grad() has no needed JAX equivalent here (no autodiff).
        if not self.reduction:
            return self.compute_values_per_batch(*args)
        out = self.compute_reduced(*args)                  # 0-d f32 on device
        if self.return_device_scalar:
            return out
        return float(jax.block_until_ready(out))           # mirrors .item()


class MSEMetric(Metric):
    """Concrete metric: per-batch mean squared error (fused reduce path)."""

    def compute_values_per_batch(self, preds, targets):
        B = preds.shape[0]
        return _mse_per_batch(preds.reshape(B, -1), targets.reshape(B, -1))

    def compute_reduced(self, preds, targets):
        B = preds.shape[0]
        return _fused_mse_reduce(preds.reshape(B, -1),
                                 targets.reshape(B, -1), self.reduction)


# ---------------------------------------------------------------------------
if __name__ == "__main__":
    key = jax.random.PRNGKey(0)
    k1, k2 = jax.random.split(key)

    B, D = 8, 256
    preds = jax.random.normal(k1, (B, D), dtype=jnp.float32)
    targets = jax.random.normal(k2, (B, D), dtype=jnp.float32)

    per_batch_ref = jnp.mean((preds - targets) ** 2, axis=1)
    ref_mean = float(jnp.mean(per_batch_ref))
    ref_sum = float(jnp.sum(per_batch_ref))

    # Fused path (mean / sum).
    val_mean = MSEMetric(reduction="mean")(preds, targets)
    val_sum = MSEMetric(reduction="sum")(preds, targets)
    assert abs(val_mean - ref_mean) < 1e-3 * max(1.0, abs(ref_mean)), (val_mean, ref_mean)
    assert abs(val_sum - ref_sum) < 1e-3 * max(1.0, abs(ref_sum)), (val_sum, ref_sum)

    # Device-scalar (no host sync) variant.
    dev_scalar = MSEMetric(reduction="mean", return_device_scalar=True)(preds, targets)
    dev_scalar = jax.block_until_ready(dev_scalar)
    assert abs(float(dev_scalar) - ref_mean) < 1e-3 * max(1.0, abs(ref_mean))

    # Multi-tile / ragged-boundary path (forced small tiles: row + col masks,
    # boundary vs interior branches, grid accumulation, megacore-safe init).
    B2, D2 = 20, 300
    p2 = jax.random.normal(k1, (B2, D2), dtype=jnp.float32)
    t2 = jax.random.normal(k2, (B2, D2), dtype=jnp.float32)
    ref2 = float(jnp.mean(jnp.mean((p2 - t2) ** 2, axis=1)))
    v2 = float(jax.block_until_ready(
        _fused_mse_reduce(p2, t2, "mean", tile_override=(8, 128))))
    assert abs(v2 - ref2) < 1e-3 * max(1.0, abs(ref2)), (v2, ref2)

    # Odd batch (TB == B, not a multiple of 8).
    B3, D3 = 5, 256
    p3 = jax.random.normal(k1, (B3, D3), dtype=jnp.float32)
    t3 = jax.random.normal(k2, (B3, D3), dtype=jnp.float32)
    ref3 = float(jnp.sum(jnp.mean((p3 - t3) ** 2, axis=1)))
    v3 = MSEMetric(reduction="sum")(p3, t3)
    assert abs(v3 - ref3) < 1e-3 * max(1.0, abs(ref3)), (v3, ref3)

    # bf16 inputs stay native through the DMA; cast to f32 in-register.
    p16 = jax.random.normal(k1, (B, D), dtype=jnp.bfloat16)
    t16 = jax.random.normal(k2, (B, D), dtype=jnp.bfloat16)
    v16 = MSEMetric(reduction="mean")(p16, t16)
    ref16 = float(jnp.mean(jnp.mean(
        (p16.astype(jnp.float32) - t16.astype(jnp.float32)) ** 2, axis=1)))
    assert abs(v16 - ref16) < 5e-3 * max(1.0, abs(ref16)), (v16, ref16)

    # Base-class unfused fallback path (tiled per-batch kernel + lane-dense reduce).
    class UnfusedMSEMetric(Metric):
        def compute_values_per_batch(self, p, t):
            Bx = p.shape[0]
            return _mse_per_batch(p.reshape(Bx, -1), t.reshape(Bx, -1))

    u_mean = UnfusedMSEMetric(reduction="mean")(preds, targets)
    assert abs(u_mean - ref_mean) < 1e-3 * max(1.0, abs(ref_mean)), (u_mean, ref_mean)

    # Per-batch values path.
    pb = jax.block_until_ready(
        MSEMetric(reduction="mean").compute_values_per_batch(preds, targets))
    assert jnp.allclose(pb.reshape(-1), per_batch_ref, atol=1e-4)

    print("KERNEL_OK")
</pallas_src>

<mosaic_0001>
module attributes {stable_mosaic.version = 11 : i64} {
  func.func @_fused_mse_reduce_kernel(%arg0: i32, %arg1: i32, %arg2: memref<8x256xf32, #tpu.memory_space<vmem>>, %arg3: memref<8x256xf32, #tpu.memory_space<vmem>>, %arg4: memref<1x8x128xf32, #tpu.memory_space<vmem>>, %arg5: memref<1x256xf32, #tpu.memory_space<vmem>>) attributes {dimension_semantics = [#tpu.dimension_semantics<parallel>, #tpu.dimension_semantics<arbitrary>], iteration_bounds = array<i64: 1, 1>, scalar_prefetch = 0 : i64, scratch_operands = 1 : i64, tpu.core_type = #tpu.core_type<tc>, window_params = [{transform_indices = @transform_0, window_bounds = array<i64: 8, 256>}, {transform_indices = @transform_1, window_bounds = array<i64: 8, 256>}, {transform_indices = @transform_2, window_bounds = array<i64: 1, 8, 128>}]} {
    %c0_i32 = arith.constant 0 : i32
    %0 = arith.cmpi eq, %arg1, %c0_i32 : i32
    %1 = arith.extui %0 : i1 to i32
    %c0_i32_0 = arith.constant 0 : i32
    %2 = arith.cmpi ne, %1, %c0_i32_0 : i32
    scf.if %2 {
      %cst_10 = arith.constant 0.000000e+00 : f32
      %15 = vector.broadcast %cst_10 : f32 to vector<1x256xf32>
      %c0_11 = arith.constant 0 : index
      %c0_12 = arith.constant 0 : index
      %16 = vector.load %arg5[%c0_11, %c0_12] : memref<1x256xf32, #tpu.memory_space<vmem>>, vector<1x256xf32>
      tpu.vector_store %arg5[%c0_11, %c0_12], %15 {strides = array<i32>} : memref<1x256xf32, #tpu.memory_space<vmem>>, vector<1x256xf32>,
    } else {
    }
    %c0 = arith.constant 0 : index
    %c0_1 = arith.constant 0 : index
    %3 = vector.load %arg2[%c0, %c0_1] : memref<8x256xf32, #tpu.memory_space<vmem>>, vector<8x256xf32>
    %c0_2 = arith.constant 0 : index
    %c0_3 = arith.constant 0 : index
    %4 = vector.load %arg3[%c0_2, %c0_3] : memref<8x256xf32, #tpu.memory_space<vmem>>, vector<8x256xf32>
    %5 = arith.subf %3, %4 : vector<8x256xf32>
    %6 = arith.mulf %5, %5 : vector<8x256xf32>
    %c0_4 = arith.constant 0 : index
    %c0_5 = arith.constant 0 : index
    %7 = vector.load %arg5[%c0_4, %c0_5] : memref<1x256xf32, #tpu.memory_space<vmem>>, vector<1x256xf32>
    %cst = arith.constant dense<0.000000e+00> : vector<256xf32>
    %8 = vector.multi_reduction <add>, %6, %cst [0] : vector<8x256xf32> to vector<256xf32>
    %9 = vector.shape_cast %8 : vector<256xf32> to vector<1x256xf32>
    %10 = arith.addf %7, %9 : vector<1x256xf32>
    %c0_6 = arith.constant 0 : index
    %c0_7 = arith.constant 0 : index
    %11 = vector.load %arg5[%c0_6, %c0_7] : memref<1x256xf32, #tpu.memory_space<vmem>>, vector<1x256xf32>
    tpu.vector_store %arg5[%c0_6, %c0_7], %10 {strides = array<i32>} : memref<1x256xf32, #tpu.memory_space<vmem>>, vector<1x256xf32>,
    %c0_i32_8 = arith.constant 0 : i32
    %12 = arith.cmpi eq, %arg1, %c0_i32_8 : i32
    %13 = arith.extui %12 : i1 to i32
    %c0_i32_9 = arith.constant 0 : i32
    %14 = arith.cmpi ne, %13, %c0_i32_9 : i32
    scf.if %14 {
      %c0_10 = arith.constant 0 : index
      %c0_11 = arith.constant 0 : index
      %15 = vector.load %arg5[%c0_10, %c0_11] : memref<1x256xf32, #tpu.memory_space<vmem>>, vector<1x256xf32>
      %16 = vector.shape_cast %15 : vector<1x256xf32> to vector<1x1x256xf32>
      %cst_12 = arith.constant dense<0.000000e+00> : vector<1xf32>
      %17 = vector.multi_reduction <add>, %16, %cst_12 [1, 2] : vector<1x1x256xf32> to vector<1xf32>
      %18 = vector.shape_cast %17 : vector<1xf32> to vector<1x1x1xf32>
      %19 = vector.extract %18[0, 0, 0] : f32 from vector<1x1x1xf32>
      %20 = tpu.iota {dimensions = array<i32: 0>} : vector<8x128xi32>
      %21 = tpu.iota {dimensions = array<i32: 1>} : vector<8x128xi32>
      %c0_i32_13 = arith.constant 0 : i32
      %22 = vector.broadcast %c0_i32_13 : i32 to vector<8x128xi32>
      %23 = arith.cmpi eq, %20, %22 : vector<8x128xi32>
      %c0_i32_14 = arith.constant 0 : i32
      %24 = vector.broadcast %c0_i32_14 : i32 to vector<8x128xi32>
      %25 = arith.cmpi eq, %21, %24 : vector<8x128xi32>
      %26 = arith.andi %23, %25 : vector<8x128xi1>
      %cst_15 = arith.constant 0.000000e+00 : f32
      %27 = vector.broadcast %19 : f32 to vector<8x128xf32>
      %28 = vector.broadcast %cst_15 : f32 to vector<8x128xf32>
      %29 = arith.select %26, %27, %28 : vector<8x128xi1>, vector<8x128xf32>
      %c0_16 = arith.constant 0 : index
      %c0_17 = arith.constant 0 : index
      %c0_18 = arith.constant 0 : index
      %30 = vector.load %arg4[%c0_16, %c0_17, %c0_18] : memref<1x8x128xf32, #tpu.memory_space<vmem>>, vector<1x8x128xf32>
      %31 = vector.shape_cast %30 : vector<1x8x128xf32> to vector<8x128xf32>
      %32 = vector.shape_cast %29 : vector<8x128xf32> to vector<1x8x128xf32>
      tpu.vector_store %arg4[%c0_16, %c0_17, %c0_18], %32 {strides = array<i32>} : memref<1x8x128xf32, #tpu.memory_space<vmem>>, vector<1x8x128xf32>,
    } else {
    }
    return
  }
  func.func @transform_0(%arg0: i32, %arg1: i32) -> (i32, i32) {
    %c0_i32 = arith.constant 0 : i32
    return %arg0, %arg1 : i32, i32
  }
  func.func @transform_1(%arg0: i32, %arg1: i32) -> (i32, i32) {
    %c0_i32 = arith.constant 0 : i32
    return %arg0, %arg1 : i32, i32
  }
  func.func @transform_2(%arg0: i32, %arg1: i32) -> (i32, i32, i32) {
    %c0_i32 = arith.constant 0 : i32
    %c0_i32_0 = arith.constant 0 : i32
    %c0_i32_1 = arith.constant 0 : i32
    return %arg0, %c0_i32, %c0_i32_0 : i32, i32, i32
  }
}

</mosaic_0001>

<llo_original>
// kernel: run.1
$region0: #{run.1}
  #allocation0 [shape = 'u32[]', space=smem, size = 0x4, offset = 0x4, fixed_abs, tag = 'smem constant byte address 0x4 - core index']
  #allocation1 [shape = 'u32[144,128]{1,0:T(1,128)}', space=vmem, size = 0x12000, scoped, tag = 'internal scratch']
  #allocation2 [shape = 'f32[1,256]{1,0:T(1,128)}', space=vmem, size = 0x400, scoped, tag = 'scratch operand']
  %s0 = inlined_call_operand.hbm [shape: f32[8,256], index: 0, kind: input, shape index: {}]
  %s1 = inlined_call_operand.hbm [shape: f32[8,256], index: 1, kind: input, shape index: {}]
  %s2 = inlined_call_operand.vmem [shape: f32[1,8,128], index: 2, kind: output, shape index: {}]
  %s3 = sld [smem:[#allocation0]]
  $region34: #{run.1} parent=0
    _
  %s5 = ssub.s32 1, %s3
  %s6 = scalar_select 0, %s5, %s3
  $region1: #{run.1} parent=0
    #allocation3 [shape = 'u8[8192]{0}', space=vmem, size = 0x2000, scoped, tag = 'input window, operand 0, single buffered']
    #allocation4 [shape = 's32[1]{0}', space=sflag, size = 0x4, scoped, tag = 'scoped memory for run.1']
    #allocation5 [shape = 'u8[8192]{0}', space=vmem, size = 0x2000, scoped, tag = 'input window, operand 1, single buffered']
    #allocation6 [shape = 's32[1]{0}', space=sflag, size = 0x4, scoped, tag = 'scoped memory for run.1']
    %7 = vsyncpa [#allocation4], 0
    %8 = vsyncpa [#allocation6], 0
    // Predicated region
    $region2: #{run.1} parent=1 // pred_check
      _
    $region3: #{run.1} parent=1 // pred_check_branch
      %10 = sbr.rel (0) target = $region5
    $region4: #{run.1} parent=1 // pred_region
      %s12 = ssub.s32 256, 256
      %13 = vsyncadd [#allocation4], %s12
      %s15 = sshll.u32 [#allocation3], 4
      %s16 = int_to_ptr.vmem [resolvable:$true] %s15
      %18 = dma.hbm_to_vmem [thread:$0]  %s0, 256, %s16, [#allocation4]
    $region5: #{run.1} parent=1 // pred_fallthru
      _
    // Predicated region
    $region6: #{run.1} parent=1 // pred_check
      _
    $region7: #{run.1} parent=1 // pred_check_branch
      %20 = sbr.rel (0) target = $region9
    $region8: #{run.1} parent=1 // pred_region
      %s22 = ssub.s32 256, 256
      %23 = vsyncadd [#allocation6], %s22
      %s25 = sshll.u32 [#allocation5], 4
      %s26 = int_to_ptr.vmem [resolvable:$true] %s25
      %28 = dma.hbm_to_vmem [thread:$0]  %s1, 256, %s26, [#allocation6]
    $region9: #{run.1} parent=1 // pred_fallthru
      _
    // Predicated region
    $region10: #{run.1} parent=1 // pred_check
      _
    $region11: #{run.1} parent=1 // pred_check_branch
      %30 = sbr.rel (0) target = $region13
    $region12: #{run.1} parent=1 // pred_region
      %31 = dma.done [#allocation4], 256
    $region13: #{run.1} parent=1 // pred_fallthru
      _
    // Predicated region
    $region14: #{run.1} parent=1 // pred_check
      _
    $region15: #{run.1} parent=1 // pred_check_branch
      %33 = sbr.rel (0) target = $region17
    $region16: #{run.1} parent=1 // pred_region
      %34 = dma.done [#allocation6], 256
    $region17: #{run.1} parent=1 // pred_fallthru
      _
    %p35 = scmp.eq.s32.totalorder 0, 0
    // Predicated region
    $region18: #{run.1} parent=1 // pred_check
      %p36 = pneg %p35
    $region19: #{run.1} parent=1 // pred_check_branch
      %38 = sbr.rel (%p36) target = $region21
    $region20: #{run.1} parent=1 // pred_region
      %v39 = vlaneseq
      %vm40 = vcmp.ge.s32.totalorder %v39, 0
      %vm41 = vcmp.lt.s32.totalorder %v39, 256
      %vm42 = vmand %vm40, %vm41
      %43 = vst.msk [vmem:[#allocation2] sm:$0x3] %vm42, 0.0
    $region21: #{run.1} parent=1 // pred_fallthru
      _
    %v44 = vld [vmem:[#allocation3] sm:$0xff]
    %v45 = vld [vmem:[#allocation3 + $0x8] sm:$0xff]
    %v46 = vld [vmem:[#allocation5] sm:$0xff]
    %v47 = vld [vmem:[#allocation5 + $0x8] sm:$0xff]
    %v48 = vsub.f32 %v44, %v46
    %v49 = vsub.f32 %v45, %v47
    %v50 = vmul.f32 %v48, %v48
    %v51 = vmul.f32 %v49, %v49
    %v52 = vld [vmem:[#allocation2] sm:$0x3]
    %v53 = vrot.slane %v50, 4
    %v54 = vadd.f32 %v50, %v53
    %v55 = vrot.slane %v54, 2
    %v56 = vadd.f32 %v54, %v55
    %v57 = vrot.slane %v56, 1
    %v58 = vadd.f32 %v56, %v57
    %v59 = vrot.slane %v51, 4
    %v60 = vadd.f32 %v51, %v59
    %v61 = vrot.slane %v60, 2
    %v62 = vadd.f32 %v60, %v61
    %v63 = vrot.slane %v62, 1
    %v64 = vadd.f32 %v62, %v63
    %v67 = vcombine.low %v58, %v64
    %v69 = vunpack.c.l.s4 1966171168
    %v70 = vunpack.c.0.s8 %v69
    %v71 = vlaneseq
    %v72 = vshrl.u32 %v71, 7
    %v73 = vsub.s32 %v70, %v72
    %v74 = vrot.slane %v67, %v73
    %v76 = vunpack.c.l.s4 1966171168
    %v77 = vunpack.c.0.s8 %v76
    %v78 = vlaneseq
    %v79 = vshrl.u32 %v78, 7
    %v80 = vsub.s32 %v77, %v79
    %v81 = vrot.slane %v74, %v80
    %v83 = vadd.f32 %v52, %v81
    %v84 = vlaneseq
    %vm85 = vcmp.ge.s32.totalorder %v84, 0
    %vm86 = vcmp.lt.s32.totalorder %v84, 256
    %vm87 = vmand %vm85, %vm86
    %88 = vst.msk [vmem:[#allocation2] sm:$0x3] %vm87, %v83
    // Predicated region
    $region22: #{run.1} parent=1 // pred_check
      %p89 = pneg %p35
    $region23: #{run.1} parent=1 // pred_check_branch
      %91 = sbr.rel (%p89) target = $region25
    $region24: #{run.1} parent=1 // pred_region
      %v92 = vld [vmem:[#allocation2] sm:$0x3]
      %v94 = vlaneseq
      %v95 = vshrl.u32 %v94, 7
      %v96 = vsub.s32 0, %v95
      %v97 = vrot.slane %v92, %v96
      %v98 = vlaneseq
      %v99 = vshrl.u32 %v98, 7
      %v100 = vsub.s32 1, %v99
      %v101 = vrot.slane %v92, %v100
      %vm104 = vcmask 1040384
      %v105 = vsel %vm104, %v97, 0.0
      %v106 = vsel %vm104, %v101, 0.0
      %v107 = vadd.f32 %v105, %v106
      %108 = vadd.xlane.f32.xlu0 %v107
      %v109 = vpop.xlane.xlu0 %108
      %v110 = vrot.slane %v109, 4
      %v111 = vadd.f32 %v109, %v110
      %v112 = vrot.slane %v111, 2
      %v113 = vadd.f32 %v111, %v112
      %v114 = vrot.slane %v113, 1
      %v115 = vadd.f32 %v113, %v114
      %s116 = vtos %v115
      %v117 = vlaneseq
      %v118 = vshrl.u32 %v117, 7
      %v119 = vlaneseq
      %v120 = vand.u32 %v119, 127
      %vm121 = vcmp.eq.s32.totalorder %v118, 0
      %vm122 = vcmp.eq.s32.totalorder %v120, 0
      %vm123 = vmand %vm121, %vm122
      %v124 = vstv %s116
      %v125 = vsel %vm123, %v124, 0.0
      %126 = vst [vmem:[%s2] sm:$0xff] %v125
    $region25: #{run.1} parent=1 // pred_fallthru
      _
    // Predicated region
    $region26: #{run.1} parent=1 // pred_check
      _
    $region27: #{run.1} parent=1 // pred_check_branch
      %128 = sbr.rel (0) target = $region29
    $region28: #{run.1} parent=1 // pred_region
      _
    $region29: #{run.1} parent=1 // pred_fallthru
      _
    // Predicated region
    $region30: #{run.1} parent=1 // pred_check
      _
    $region31: #{run.1} parent=1 // pred_check_branch
      %130 = sbr.rel (0) target = $region33
    $region32: #{run.1} parent=1 // pred_region
      _
    $region33: #{run.1} parent=1 // pred_fallthru
      _
    %131 = vsyncpa [#allocation4], 1
    %132 = vsyncpa [#allocation6], 1

</llo_original>
